<compile_context>
chip_gen: v5e
topology: v5e:2x2
jax: 0.10.0
libtpu: 0.0.40
codegen_flags: <defaults>
</compile_context>

<pallas_src>
import math
from functools import partial

import jax
import jax.numpy as jnp
from jax.experimental import pallas as pl
from jax.experimental.pallas import tpu as pltpu

LANE = 128


def _round_up(x, m):
    return ((x + m - 1) // m) * m


# ---------------------------------------------------------------------------
# Pallas kernel: packed (mu ++ sigma) 3-layer MLP, one lane-dense output slab.
# ---------------------------------------------------------------------------
def _fused_gaussian_constraint_kernel(
    n_out,
    x_ref, w1_ref, w2_ref, w3_ref, b_ref,
    out_ref,
):
    x = x_ref[...].astype(jnp.float32)  # state.float()

    h = jnp.dot(x, w1_ref[...], preferred_element_type=jnp.float32)
    h = jnp.maximum(h + b_ref[0:1, :w1_ref.shape[1]], 0.0)

    h = jnp.dot(h, w2_ref[...], preferred_element_type=jnp.float32)
    h = jnp.maximum(h + b_ref[1:2, :w2_ref.shape[1]], 0.0)

    o = jnp.dot(h, w3_ref[...], preferred_element_type=jnp.float32)
    o = o + b_ref[2:3, :w3_ref.shape[1]]

    # Softplus on the mu lanes [0, n_out) only; sigma / padding lanes pass
    # through.  Numerically stable log(1+exp(v)), matching torch.nn.Softplus.
    sp = jnp.maximum(o, 0.0) + jnp.log1p(jnp.exp(-jnp.abs(o)))
    lane = jax.lax.broadcasted_iota(jnp.int32, o.shape, dimension=1)
    out_ref[...] = jnp.where(lane < n_out, sp, o)


# ---------------------------------------------------------------------------
# Parameter construction + one-time packing (mu-net || sigma-net, lane-padded)
# ---------------------------------------------------------------------------
def _xavier_uniform(key, fan_in, fan_out, gain):
    # matches nn.init.xavier_uniform_ (gain * sqrt(6 / (fan_in + fan_out)))
    limit = gain * math.sqrt(6.0 / (fan_in + fan_out))
    # stored as (in, out): transpose of torch's (out, in) layout
    return jax.random.uniform(key, (fan_in, fan_out), jnp.float32, -limit, limit)


def init_params(key, n_input, n_features, n_output, activation="relu"):
    """Deterministic parameters for both MLPs (3 Linear layers each).

    Weights: xavier_uniform with gain = calculate_gain('relu') = sqrt(2),
    custom_scale = 1, as in weight_init(). Biases: zeros (weight_init leaves
    torch's default bias init untouched; a deterministic zero init is used here).
    """
    gain = math.sqrt(2.0) if activation == "relu" else 1.0
    dims = [n_input] + list(n_features) + [n_output]
    params = {}
    keys = jax.random.split(key, 2 * (len(dims) - 1))
    k_idx = 0
    for net in ("mu", "sigma"):
        ws, bs = [], []
        for i in range(len(dims) - 1):
            ws.append(_xavier_uniform(keys[k_idx], dims[i], dims[i + 1], gain))
            bs.append(jnp.zeros((1, dims[i + 1]), jnp.float32))
            k_idx += 1
        params[net] = (ws, bs)
    return params


def _block_diag(a, b):
    top = jnp.concatenate([a, jnp.zeros((a.shape[0], b.shape[1]), a.dtype)], axis=1)
    bot = jnp.concatenate([jnp.zeros((b.shape[0], a.shape[1]), b.dtype), b], axis=1)
    return jnp.concatenate([top, bot], axis=0)


def pack_params(params):
    """Pack mu/sigma nets into block-diagonal, lane-padded weights (done ONCE).

    Widths are zero-padded up to multiples of 128 lanes so every matmul / VPU op
    in the kernel runs full-lane and the output store is unmasked.  Zero padding
    is exact through Linear+ReLU (padded lanes stay zero and are sliced away).
    """
    wm, bm = params["mu"]
    ws, bs = params["sigma"]
    n_out = int(wm[2].shape[1])

    w1 = jnp.concatenate([wm[0], ws[0]], axis=1)   # (D_in, 2*f0)
    w2 = _block_diag(wm[1], ws[1])                 # (2*f0, 2*f1)
    w3 = _block_diag(wm[2], ws[2])                 # (2*f1, 2*n_out)
    b1 = jnp.concatenate([bm[0], bs[0]], axis=1)
    b2 = jnp.concatenate([bm[1], bs[1]], axis=1)
    b3 = jnp.concatenate([bm[2], bs[2]], axis=1)

    hp0 = _round_up(w1.shape[1], LANE)
    hp1 = _round_up(w2.shape[1], LANE)
    out_w = _round_up(w3.shape[1], LANE)
    bw = max(hp0, hp1, out_w)

    def pad2(a, rows, cols):
        return jnp.pad(a, ((0, rows - a.shape[0]), (0, cols - a.shape[1])))

    return {
        "w1": pad2(w1, w1.shape[0], hp0),                     # (D_in, 128)
        "w2": pad2(w2, hp0, hp1),                             # (128, 128)
        "w3": pad2(w3, hp1, out_w),                           # (128, 128)
        "bias": jnp.concatenate(                              # (3, 128)
            [pad2(b1, 1, bw), pad2(b2, 1, bw), pad2(b3, 1, bw)], axis=0),
        "n_out": n_out,
    }


# ---------------------------------------------------------------------------
# Wrapper
# ---------------------------------------------------------------------------
def gaussian_constraint_forward(state, packed, *, tile_b=1024,
                                max_single_block_rows=4096):
    """Fused forward.  state: (B, D_in).  Returns (mu_flat, sigma_flat)."""
    state = state.astype(jnp.float32)
    B, D_in = state.shape
    n_out = packed["n_out"]
    out_w = packed["w3"].shape[1]

    if B <= max_single_block_rows:
        # Single block: minimizes per-grid-step overhead (~0.35us/step) which
        # dominates this tiny MLP; block is small enough for v7x's 64 MiB VMEM.
        tb, b_pad = B, B
    else:
        # Bounded tiles for very large batches (cdiv grid via wrapper padding).
        tb = tile_b                      # multiple of 8 sublanes
        b_pad = _round_up(B, tb)
        if b_pad != B:
            state = jnp.pad(state, ((0, b_pad - B), (0, 0)))
    grid = (b_pad // tb,)

    def resident(arr):  # weights/biases: same block every grid step (stay in VMEM)
        return pl.BlockSpec(arr.shape, lambda i: (0,) * arr.ndim)

    kernel = partial(_fused_gaussian_constraint_kernel, n_out)

    out = pl.pallas_call(
        kernel,
        grid=grid,
        in_specs=[
            pl.BlockSpec((tb, D_in), lambda i: (i, 0)),
            resident(packed["w1"]),
            resident(packed["w2"]),
            resident(packed["w3"]),
            resident(packed["bias"]),
        ],
        out_specs=pl.BlockSpec((tb, out_w), lambda i: (i, 0)),
        out_shape=jax.ShapeDtypeStruct((b_pad, out_w), jnp.float32),
        compiler_params=pltpu.CompilerParams(
            # "parallel" vs "arbitrary" measures ~0%; real v7x core sharding
            # would need CORE_PARALLEL and isn't worth it at these shapes.
            dimension_semantics=("arbitrary",)),
    )(state, packed["w1"], packed["w2"], packed["w3"], packed["bias"])

    out = out[:B]
    mu = out[:, :n_out]
    sigma = out[:, n_out:2 * n_out]
    return mu.reshape(-1), sigma.reshape(-1)


# ---------------------------------------------------------------------------
# Pure-JAX reference (unpacked params) for sanity checking
# ---------------------------------------------------------------------------
def _reference_forward(state, params):
    x = state.astype(jnp.float32)

    def run(ws, bs, final_softplus):
        h = jax.nn.relu(x @ ws[0] + bs[0])
        h = jax.nn.relu(h @ ws[1] + bs[1])
        o = h @ ws[2] + bs[2]
        return jax.nn.softplus(o) if final_softplus else o

    mu = run(*params["mu"], True)
    sigma = run(*params["sigma"], False)
    return mu.reshape(-1), sigma.reshape(-1)


if __name__ == "__main__":
    key = jax.random.PRNGKey(0)
    k_param, k_state, k_big = jax.random.split(key, 3)

    # Shapes implied by the module: input_shape=(8,), output_shape=(4,),
    # n_features=[32, 32], batch=2.
    B, n_input, n_features, n_output = 2, 8, [32, 32], 4

    params = init_params(k_param, n_input, n_features, n_output, activation="relu")
    packed = pack_params(params)

    # --- small-batch path (single full-array block) ---
    state = jax.random.normal(k_state, (B, n_input), jnp.float32)
    mu, sigma = gaussian_constraint_forward(state, packed)
    jax.block_until_ready((mu, sigma))

    mu_ref, sigma_ref = _reference_forward(state, params)
    assert mu.shape == (B * n_output,) and sigma.shape == (B * n_output,)
    assert jnp.allclose(mu, mu_ref, atol=1e-5), "mu mismatch (small batch)"
    assert jnp.allclose(sigma, sigma_ref, atol=1e-5), "sigma mismatch (small batch)"

    # --- tiled path (cdiv grid with a padded last tile, resident weights) ---
    B_big = 1000  # not a multiple of the tile -> exercises wrapper padding
    state_big = jax.random.normal(k_big, (B_big, n_input), jnp.float32)
    mu_b, sigma_b = gaussian_constraint_forward(
        state_big, packed, tile_b=256, max_single_block_rows=128)
    jax.block_until_ready((mu_b, sigma_b))

    mu_bref, sigma_bref = _reference_forward(state_big, params)
    assert jnp.allclose(mu_b, mu_bref, atol=1e-5), "mu mismatch (tiled batch)"
    assert jnp.allclose(sigma_b, sigma_bref, atol=1e-5), "sigma mismatch (tiled batch)"

    print("KERNEL_OK")
</pallas_src>

<mosaic_0001>
module attributes {stable_mosaic.version = 11 : i64} {
  func.func @_fused_gaussian_constraint_kernel(%arg0: i32, %arg1: memref<2x8xf32, #tpu.memory_space<vmem>>, %arg2: memref<8x128xf32, #tpu.memory_space<vmem>>, %arg3: memref<128x128xf32, #tpu.memory_space<vmem>>, %arg4: memref<128x128xf32, #tpu.memory_space<vmem>>, %arg5: memref<3x128xf32, #tpu.memory_space<vmem>>, %arg6: memref<2x128xf32, #tpu.memory_space<vmem>>) attributes {dimension_semantics = [#tpu.dimension_semantics<arbitrary>], iteration_bounds = array<i64: 1>, scalar_prefetch = 0 : i64, scratch_operands = 0 : i64, tpu.core_type = #tpu.core_type<tc>, window_params = [{transform_indices = @transform_0, window_bounds = array<i64: 2, 8>}, {pipeline_mode = #tpu.pipeline_mode<synchronous>, transform_indices = @transform_1, window_bounds = array<i64: 8, 128>}, {pipeline_mode = #tpu.pipeline_mode<synchronous>, transform_indices = @transform_2, window_bounds = array<i64: 128, 128>}, {pipeline_mode = #tpu.pipeline_mode<synchronous>, transform_indices = @transform_3, window_bounds = array<i64: 128, 128>}, {pipeline_mode = #tpu.pipeline_mode<synchronous>, transform_indices = @transform_4, window_bounds = array<i64: 3, 128>}, {transform_indices = @transform_5, window_bounds = array<i64: 2, 128>}]} {
    %c0 = arith.constant 0 : index
    %c0_0 = arith.constant 0 : index
    %0 = vector.load %arg1[%c0, %c0_0] : memref<2x8xf32, #tpu.memory_space<vmem>>, vector<2x8xf32>
    %c0_1 = arith.constant 0 : index
    %c0_2 = arith.constant 0 : index
    %1 = vector.load %arg2[%c0_1, %c0_2] : memref<8x128xf32, #tpu.memory_space<vmem>>, vector<8x128xf32>
    %cst = arith.constant dense<0.000000e+00> : vector<2x128xf32>
    %2 = tpu.matmul %0, %1, %cst {dimension_numbers = #tpu.dot_dimension_numbers<[1], [0], [0], [1], [0, 0, 1, 1], [], []>} : vector<2x8xf32>, vector<8x128xf32>, vector<2x128xf32> -> vector<2x128xf32>
    %c0_3 = arith.constant 0 : index
    %c0_4 = arith.constant 0 : index
    %3 = vector.load %arg5[%c0_3, %c0_4] : memref<3x128xf32, #tpu.memory_space<vmem>>, vector<1x128xf32>
    %4 = vector.broadcast %3 : vector<1x128xf32> to vector<2x128xf32>
    %5 = arith.addf %2, %4 : vector<2x128xf32>
    %cst_5 = arith.constant 0.000000e+00 : f32
    %6 = vector.broadcast %cst_5 : f32 to vector<2x128xf32>
    %7 = arith.maximumf %5, %6 : vector<2x128xf32>
    %c0_6 = arith.constant 0 : index
    %c0_7 = arith.constant 0 : index
    %8 = vector.load %arg3[%c0_6, %c0_7] : memref<128x128xf32, #tpu.memory_space<vmem>>, vector<128x128xf32>
    %cst_8 = arith.constant dense<0.000000e+00> : vector<2x128xf32>
    %9 = tpu.matmul %7, %8, %cst_8 {dimension_numbers = #tpu.dot_dimension_numbers<[1], [0], [0], [1], [0, 0, 1, 1], [], []>} : vector<2x128xf32>, vector<128x128xf32>, vector<2x128xf32> -> vector<2x128xf32>
    %c1 = arith.constant 1 : index
    %c0_9 = arith.constant 0 : index
    %10 = vector.load %arg5[%c1, %c0_9] : memref<3x128xf32, #tpu.memory_space<vmem>>, vector<1x128xf32>
    %11 = vector.broadcast %10 : vector<1x128xf32> to vector<2x128xf32>
    %12 = arith.addf %9, %11 : vector<2x128xf32>
    %cst_10 = arith.constant 0.000000e+00 : f32
    %13 = vector.broadcast %cst_10 : f32 to vector<2x128xf32>
    %14 = arith.maximumf %12, %13 : vector<2x128xf32>
    %c0_11 = arith.constant 0 : index
    %c0_12 = arith.constant 0 : index
    %15 = vector.load %arg4[%c0_11, %c0_12] : memref<128x128xf32, #tpu.memory_space<vmem>>, vector<128x128xf32>
    %cst_13 = arith.constant dense<0.000000e+00> : vector<2x128xf32>
    %16 = tpu.matmul %14, %15, %cst_13 {dimension_numbers = #tpu.dot_dimension_numbers<[1], [0], [0], [1], [0, 0, 1, 1], [], []>} : vector<2x128xf32>, vector<128x128xf32>, vector<2x128xf32> -> vector<2x128xf32>
    %c2 = arith.constant 2 : index
    %c0_14 = arith.constant 0 : index
    %17 = vector.load %arg5[%c2, %c0_14] : memref<3x128xf32, #tpu.memory_space<vmem>>, vector<1x128xf32>
    %18 = vector.broadcast %17 : vector<1x128xf32> to vector<2x128xf32>
    %19 = arith.addf %16, %18 : vector<2x128xf32>
    %cst_15 = arith.constant 0.000000e+00 : f32
    %20 = vector.broadcast %cst_15 : f32 to vector<2x128xf32>
    %21 = arith.maximumf %19, %20 : vector<2x128xf32>
    %22 = math.absf %19 : vector<2x128xf32>
    %cst_16 = arith.constant 0.000000e+00 : f32
    %23 = vector.broadcast %cst_16 : f32 to vector<2x128xf32>
    %24 = arith.subf %23, %22 : vector<2x128xf32>
    %25 = math.exp %24 : vector<2x128xf32>
    %26 = math.log1p %25 : vector<2x128xf32>
    %27 = arith.addf %21, %26 : vector<2x128xf32>
    %28 = tpu.iota {dimensions = array<i32: 1>} : vector<2x128xi32>
    %c4_i32 = arith.constant 4 : i32
    %29 = vector.broadcast %c4_i32 : i32 to vector<2x128xi32>
    %30 = arith.cmpi slt, %28, %29 : vector<2x128xi32>
    %31 = arith.select %30, %27, %19 : vector<2x128xi1>, vector<2x128xf32>
    %c0_17 = arith.constant 0 : index
    %c0_18 = arith.constant 0 : index
    %32 = vector.load %arg6[%c0_17, %c0_18] : memref<2x128xf32, #tpu.memory_space<vmem>>, vector<2x128xf32>
    tpu.vector_store %arg6[%c0_17, %c0_18], %31 {strides = array<i32>} : memref<2x128xf32, #tpu.memory_space<vmem>>, vector<2x128xf32>,
    return
  }
  func.func @transform_0(%arg0: i32) -> (i32, i32) {
    %c0_i32 = arith.constant 0 : i32
    %c0_i32_0 = arith.constant 0 : i32
    return %arg0, %c0_i32 : i32, i32
  }
  func.func @transform_1(%arg0: i32) -> (i32, i32) {
    %c0_i32 = arith.constant 0 : i32
    %c0_i32_0 = arith.constant 0 : i32
    %c0_i32_1 = arith.constant 0 : i32
    return %c0_i32, %c0_i32_0 : i32, i32
  }
  func.func @transform_2(%arg0: i32) -> (i32, i32) {
    %c0_i32 = arith.constant 0 : i32
    %c0_i32_0 = arith.constant 0 : i32
    %c0_i32_1 = arith.constant 0 : i32
    return %c0_i32, %c0_i32_0 : i32, i32
  }
  func.func @transform_3(%arg0: i32) -> (i32, i32) {
    %c0_i32 = arith.constant 0 : i32
    %c0_i32_0 = arith.constant 0 : i32
    %c0_i32_1 = arith.constant 0 : i32
    return %c0_i32, %c0_i32_0 : i32, i32
  }
  func.func @transform_4(%arg0: i32) -> (i32, i32) {
    %c0_i32 = arith.constant 0 : i32
    %c0_i32_0 = arith.constant 0 : i32
    %c0_i32_1 = arith.constant 0 : i32
    return %c0_i32, %c0_i32_0 : i32, i32
  }
  func.func @transform_5(%arg0: i32) -> (i32, i32) {
    %c0_i32 = arith.constant 0 : i32
    %c0_i32_0 = arith.constant 0 : i32
    return %arg0, %c0_i32 : i32, i32
  }
}

</mosaic_0001>

<llo_original>
// kernel: tpu_custom_call.1
$region0: #{tpu_custom_call.1}
  #allocation0 [shape = 'u32[]', space=smem, size = 0x4, offset = 0x4, fixed_abs, tag = 'smem constant byte address 0x4 - core index']
  #allocation1 [shape = 'u32[72,128]{1,0:T(1,128)}', space=vmem, size = 0x9000, scoped, tag = 'internal scratch']
  %s0 = inlined_call_operand.hbm [shape: f32[2,8], index: 0, kind: input, shape index: {}]
  %s1 = inlined_call_operand.hbm [shape: f32[8,128], index: 1, kind: input, shape index: {}]
  %s2 = inlined_call_operand.hbm [shape: f32[128,128], index: 2, kind: input, shape index: {}]
  %s3 = inlined_call_operand.hbm [shape: f32[128,128], index: 3, kind: input, shape index: {}]
  %s4 = inlined_call_operand.hbm [shape: f32[3,128], index: 4, kind: input, shape index: {}]
  %s5 = inlined_call_operand.hbm [shape: f32[2,128], index: 5, kind: output, shape index: {}]
  %s6 = sld [smem:[#allocation0]]
  $region50: #{tpu_custom_call.1} parent=0
    _
  %s8 = ssub.s32 1, %s6
  %s9 = scalar_select 0, %s8, %s6
  $region1: #{tpu_custom_call.1} parent=0
    #allocation2 [shape = 'u8[1024]{0}', space=vmem, size = 0x400, scoped, tag = 'input window, operand 0, single buffered']
    #allocation3 [shape = 's32[1]{0}', space=sflag, size = 0x4, scoped, tag = 'scoped memory for tpu_custom_call.1']
    #allocation4 [shape = 's32[1]{0}', space=sflag, size = 0x4, scoped, tag = 'scoped memory for tpu_custom_call.1']
    #allocation5 [shape = 'u8[4096]{0}', space=vmem, size = 0x1000, scoped, tag = 'input window, operand 1, single buffered']
    #allocation6 [shape = 's32[1]{0}', space=sflag, size = 0x4, scoped, tag = 'scoped memory for tpu_custom_call.1']
    #allocation7 [shape = 'u8[65536]{0}', space=vmem, size = 0x10000, scoped, tag = 'input window, operand 2, single buffered']
    #allocation8 [shape = 'u8[65536]{0}', space=vmem, size = 0x10000, scoped, tag = 'input window, operand 3, single buffered']
    #allocation9 [shape = 's32[1]{0}', space=sflag, size = 0x4, scoped, tag = 'scoped memory for tpu_custom_call.1']
    #allocation10 [shape = 'u8[2048]{0}', space=vmem, size = 0x800, scoped, tag = 'input window, operand 4, single buffered']
    #allocation11 [shape = 'u8[1024]{0}', space=vmem, size = 0x400, scoped, tag = 'output window, operand 0, single buffered']
    %10 = vsyncpa [#allocation3], 0
    %11 = vsyncpa [#allocation6], 0
    %12 = vsyncpa [#allocation9], 0
    %13 = vsyncpa [#allocation4], 0
    // Predicated region
    $region2: #{tpu_custom_call.1} parent=1 // pred_check
      _
    $region3: #{tpu_custom_call.1} parent=1 // pred_check_branch
      %15 = sbr.rel (0) target = $region5
    $region4: #{tpu_custom_call.1} parent=1 // pred_region
      %17 = vsyncadd [#allocation3], 0
      %s19 = sshll.u32 %s0, 4
      %s20 = int_to_ptr.hbm [resolvable:$true] %s19
      %s21 = sshll.u32 [#allocation2], 4
      %s22 = int_to_ptr.vmem [resolvable:$true] %s21
      %24 = dma.hbm_to_vmem [thread:$0]  %s20, 32, %s22, [#allocation3]
    $region5: #{tpu_custom_call.1} parent=1 // pred_fallthru
      _
    // Predicated region
    $region6: #{tpu_custom_call.1} parent=1 // pred_check
      _
    $region7: #{tpu_custom_call.1} parent=1 // pred_check_branch
      %26 = sbr.rel (0) target = $region9
    $region8: #{tpu_custom_call.1} parent=1 // pred_region
      %28 = vsyncadd [#allocation6], 0
      %s30 = sshll.u32 %s1, 4
      %s31 = int_to_ptr.hbm [resolvable:$true] %s30
      %s32 = sshll.u32 [#allocation5], 4
      %s33 = int_to_ptr.vmem [resolvable:$true] %s32
      %35 = dma.hbm_to_vmem [thread:$0]  %s31, 128, %s33, [#allocation6]
    $region9: #{tpu_custom_call.1} parent=1 // pred_fallthru
      _
    // Predicated region
    $region10: #{tpu_custom_call.1} parent=1 // pred_check
      _
    $region11: #{tpu_custom_call.1} parent=1 // pred_check_branch
      %37 = sbr.rel (0) target = $region13
    $region12: #{tpu_custom_call.1} parent=1 // pred_region
      %39 = vsyncadd [#allocation6], 0
      %s40 = sshll.u32 %s2, 4
      %s41 = int_to_ptr.hbm [resolvable:$true] %s40
      %s42 = sshll.u32 [#allocation7], 4
      %s43 = int_to_ptr.vmem [resolvable:$true] %s42
      %48 = dma.hbm_to_vmem [thread:$0]  %s41, 2048, %s43, [#allocation6], 128, 128, 8
    $region13: #{tpu_custom_call.1} parent=1 // pred_fallthru
      _
    // Predicated region
    $region14: #{tpu_custom_call.1} parent=1 // pred_check
      _
    $region15: #{tpu_custom_call.1} parent=1 // pred_check_branch
      %50 = sbr.rel (0) target = $region17
    $region16: #{tpu_custom_call.1} parent=1 // pred_region
      %52 = vsyncadd [#allocation9], 0
      %s53 = sshll.u32 %s3, 4
      %s54 = int_to_ptr.hbm [resolvable:$true] %s53
      %s55 = sshll.u32 [#allocation8], 4
      %s56 = int_to_ptr.vmem [resolvable:$true] %s55
      %61 = dma.hbm_to_vmem [thread:$0]  %s54, 2048, %s56, [#allocation9], 128, 128, 8
    $region17: #{tpu_custom_call.1} parent=1 // pred_fallthru
      _
    // Predicated region
    $region18: #{tpu_custom_call.1} parent=1 // pred_check
      _
    $region19: #{tpu_custom_call.1} parent=1 // pred_check_branch
      %63 = sbr.rel (0) target = $region21
    $region20: #{tpu_custom_call.1} parent=1 // pred_region
      %65 = vsyncadd [#allocation9], 0
      %s67 = sshll.u32 %s4, 4
      %s68 = int_to_ptr.hbm [resolvable:$true] %s67
      %s69 = sshll.u32 [#allocation10], 4
      %s70 = int_to_ptr.vmem [resolvable:$true] %s69
      %72 = dma.hbm_to_vmem [thread:$0]  %s68, 64, %s70, [#allocation9]
    $region21: #{tpu_custom_call.1} parent=1 // pred_fallthru
      _
    // Predicated region
    $region22: #{tpu_custom_call.1} parent=1 // pred_check
      _
    $region23: #{tpu_custom_call.1} parent=1 // pred_check_branch
      %74 = sbr.rel (0) target = $region25
    $region24: #{tpu_custom_call.1} parent=1 // pred_region
      %76 = dma.done [#allocation3], 32
    $region25: #{tpu_custom_call.1} parent=1 // pred_fallthru
      _
    // Predicated region
    $region26: #{tpu_custom_call.1} parent=1 // pred_check
      _
    $region27: #{tpu_custom_call.1} parent=1 // pred_check_branch
      %78 = sbr.rel (0) target = $region29
    $region28: #{tpu_custom_call.1} parent=1 // pred_region
      %80 = dma.done [#allocation6], 128
    $region29: #{tpu_custom_call.1} parent=1 // pred_fallthru
      _
    // Predicated region
    $region30: #{tpu_custom_call.1} parent=1 // pred_check
      _
    $region31: #{tpu_custom_call.1} parent=1 // pred_check_branch
      %82 = sbr.rel (0) target = $region33
    $region32: #{tpu_custom_call.1} parent=1 // pred_region
      %84 = dma.done [#allocation6], 2048
    $region33: #{tpu_custom_call.1} parent=1 // pred_fallthru
      _
    // Predicated region
    $region34: #{tpu_custom_call.1} parent=1 // pred_check
      _
    $region35: #{tpu_custom_call.1} parent=1 // pred_check_branch
      %86 = sbr.rel (0) target = $region37
    $region36: #{tpu_custom_call.1} parent=1 // pred_region
      %88 = dma.done [#allocation9], 2048
    $region37: #{tpu_custom_call.1} parent=1 // pred_fallthru
      _
    // Predicated region
    $region38: #{tpu_custom_call.1} parent=1 // pred_check
      _
    $region39: #{tpu_custom_call.1} parent=1 // pred_check_branch
      %90 = sbr.rel (0) target = $region41
    $region40: #{tpu_custom_call.1} parent=1 // pred_region
      %92 = dma.done [#allocation9], 64
    $region41: #{tpu_custom_call.1} parent=1 // pred_fallthru
      _
    %v93 = vld [vmem:[#allocation2] sm:$0x3]
    %v94 = vld [vmem:[#allocation5] sm:$0xff]
    %v95 = vld [vmem:[#allocation10] sm:$0x1]
    %v96 = vperm.slane %v95, 0
    %vm97 = vcmask 64512
    %v99 = vsel %vm97, %v93, 0
    %101 = vmatpush.msra.mxu0 0.0
    %102 = vmatpush.msra.mxu0 0.0
    %103 = vmatpush.msra.mxu0 0.0
    %104 = vmatpush.msra.mxu0 0.0
    %105 = vmatpush.msra.mxu0 0.0
    %106 = vmatpush.msra.mxu0 0.0
    %107 = vmatpush.msra.mxu0 0.0
    %108 = vmatpush.msra.mxu0 0.0
    %109 = vmatpush.msra.mxu0 0.0
    %110 = vmatpush.msra.mxu0 0.0
    %111 = vmatpush.msra.mxu0 0.0
    %112 = vmatpush.msra.mxu0 0.0
    %113 = vmatpush.msra.mxu0 0.0
    %114 = vmatpush.msra.mxu0 0.0
    %115 = vmatpush.msra.mxu0 0.0
    %116 = vmatpush.msra.mxu0 %v94
    %117 = vmatmul.f32.gmra.mxu0 %v99
    %v118 = vpop.f32.mrf.mxu0
    %v119 = vadd.f32 %v96, %v118
    %120 = vdwg.mxu0
    %v121 = vmax.f32 %v119, 0.0
    %v122 = vld [vmem:[#allocation7] sm:$0xff]
    %v123 = vld [vmem:[#allocation7 + $0x8] sm:$0xff]
    %v124 = vld [vmem:[#allocation7 + $0x10] sm:$0xff]
    %v125 = vld [vmem:[#allocation7 + $0x18] sm:$0xff]
    %v126 = vld [vmem:[#allocation7 + $0x20] sm:$0xff]
    %v127 = vld [vmem:[#allocation7 + $0x28] sm:$0xff]
    %v128 = vld [vmem:[#allocation7 + $0x30] sm:$0xff]
    %v129 = vld [vmem:[#allocation7 + $0x38] sm:$0xff]
    %v130 = vld [vmem:[#allocation7 + $0x40] sm:$0xff]
    %v131 = vld [vmem:[#allocation7 + $0x48] sm:$0xff]
    %v132 = vld [vmem:[#allocation7 + $0x50] sm:$0xff]
    %v133 = vld [vmem:[#allocation7 + $0x58] sm:$0xff]
    %v134 = vld [vmem:[#allocation7 + $0x60] sm:$0xff]
    %v135 = vld [vmem:[#allocation7 + $0x68] sm:$0xff]
    %v136 = vld [vmem:[#allocation7 + $0x70] sm:$0xff]
    %v137 = vld [vmem:[#allocation7 + $0x78] sm:$0xff]
    %v138 = vld [vmem:[#allocation10 + $0x1] sm:$0x1]
    %v139 = vperm.slane %v138, 0
    %140 = vmatpush.msra.mxu0 %v137
    %141 = vmatpush.msra.mxu0 %v136
    %142 = vmatpush.msra.mxu0 %v135
    %143 = vmatpush.msra.mxu0 %v134
    %144 = vmatpush.msra.mxu0 %v133
    %145 = vmatpush.msra.mxu0 %v132
    %146 = vmatpush.msra.mxu0 %v131
    %147 = vmatpush.msra.mxu0 %v130
    %148 = vmatpush.msra.mxu0 %v129
    %149 = vmatpush.msra.mxu0 %v128
    %150 = vmatpush.msra.mxu0 %v127
    %151 = vmatpush.msra.mxu0 %v126
    %152 = vmatpush.msra.mxu0 %v125
    %153 = vmatpush.msra.mxu0 %v124
    %154 = vmatpush.msra.mxu0 %v123
    %155 = vmatpush.msra.mxu0 %v122
    %156 = vmatmul.f32.gmra.mxu0 %v121
    %v157 = vpop.f32.mrf.mxu0
    %v158 = vadd.f32 %v139, %v157
    %159 = vdwg.mxu0
    %v160 = vmax.f32 %v158, 0.0
    %v161 = vld [vmem:[#allocation8] sm:$0xff]
    %v162 = vld [vmem:[#allocation8 + $0x8] sm:$0xff]
    %v163 = vld [vmem:[#allocation8 + $0x10] sm:$0xff]
    %v164 = vld [vmem:[#allocation8 + $0x18] sm:$0xff]
    %v165 = vld [vmem:[#allocation8 + $0x20] sm:$0xff]
    %v166 = vld [vmem:[#allocation8 + $0x28] sm:$0xff]
    %v167 = vld [vmem:[#allocation8 + $0x30] sm:$0xff]
    %v168 = vld [vmem:[#allocation8 + $0x38] sm:$0xff]
    %v169 = vld [vmem:[#allocation8 + $0x40] sm:$0xff]
    %v170 = vld [vmem:[#allocation8 + $0x48] sm:$0xff]
    %v171 = vld [vmem:[#allocation8 + $0x50] sm:$0xff]
    %v172 = vld [vmem:[#allocation8 + $0x58] sm:$0xff]
    %v173 = vld [vmem:[#allocation8 + $0x60] sm:$0xff]
    %v174 = vld [vmem:[#allocation8 + $0x68] sm:$0xff]
    %v175 = vld [vmem:[#allocation8 + $0x70] sm:$0xff]
    %v176 = vld [vmem:[#allocation8 + $0x78] sm:$0xff]
    %v177 = vld [vmem:[#allocation10 + $0x2] sm:$0x1]
    %v178 = vperm.slane %v177, 0
    %179 = vmatpush.msra.mxu0 %v176
    %180 = vmatpush.msra.mxu0 %v175
    %181 = vmatpush.msra.mxu0 %v174
    %182 = vmatpush.msra.mxu0 %v173
    %183 = vmatpush.msra.mxu0 %v172
    %184 = vmatpush.msra.mxu0 %v171
    %185 = vmatpush.msra.mxu0 %v170
    %186 = vmatpush.msra.mxu0 %v169
    %187 = vmatpush.msra.mxu0 %v168
    %188 = vmatpush.msra.mxu0 %v167
    %189 = vmatpush.msra.mxu0 %v166
    %190 = vmatpush.msra.mxu0 %v165
    %191 = vmatpush.msra.mxu0 %v164
    %192 = vmatpush.msra.mxu0 %v163
    %193 = vmatpush.msra.mxu0 %v162
    %194 = vmatpush.msra.mxu0 %v161
    %195 = vmatmul.f32.gmra.mxu0 %v160
    %v196 = vpop.f32.mrf.mxu0
    %v197 = vadd.f32 %v178, %v196
    %198 = vdwg.mxu0
    %v199 = vmax.f32 %v197, 0.0
    %v200 = vand.u32 2147483647, %v197
    %v201 = vsub.f32 0.0, %v200
    %v202 = vmul.f32 %v201, 1.442695
    %v203 = vpow.pop %v202
    %v204 = vadd.f32 %v203, 1.0
    %v205 = vlog2.pop %v204
    %v206 = vmul.f32 %v205, 0.6931472
    %v207 = vmul.f32 -0.5, %v203
    %v208 = vadd.f32 %v207, 1.0
    %v209 = vmul.f32 %v208, %v203
    %v210 = vand.u32 2147483647, %v203
    %vm211 = vcmp.lt.f32.partialorder %v210, 0.0004427343
    %v212 = vsel %vm211, %v209, %v206
    %v213 = vadd.f32 %v199, %v212
    %v214 = vlaneseq
    %v215 = vand.u32 %v214, 127
    %vm216 = vcmp.lt.s32.totalorder %v215, 4
    %v217 = vsel %vm216, %v213, %v197
    %218 = vst [vmem:[#allocation11] sm:$0x3] %v217
    // Predicated region
    $region42: #{tpu_custom_call.1} parent=1 // pred_check
      _
    $region43: #{tpu_custom_call.1} parent=1 // pred_check_branch
      %220 = sbr.rel (0) target = $region45
    $region44: #{tpu_custom_call.1} parent=1 // pred_region
      %222 = vsyncadd [#allocation4], 0
      %s224 = sshll.u32 [#allocation11], 4
      %s225 = int_to_ptr.vmem [resolvable:$true] %s224
      %s226 = sshll.u32 %s5, 4
      %s227 = int_to_ptr.hbm [resolvable:$true] %s226
      %229 = dma.vmem_to_hbm [thread:$0]  %s225, 32, %s227, [#allocation4]
    $region45: #{tpu_custom_call.1} parent=1 // pred_fallthru
      _
    // Predicated region
    $region46: #{tpu_custom_call.1} parent=1 // pred_check
      _
    $region47: #{tpu_custom_call.1} parent=1 // pred_check_branch
      %231 = sbr.rel (0) target = $region49
    $region48: #{tpu_custom_call.1} parent=1 // pred_region
      %233 = dma.done [#allocation4], 32
    $region49: #{tpu_custom_call.1} parent=1 // pred_fallthru
      _
    %234 = vsyncpa [#allocation3], 1
    %235 = vsyncpa [#allocation6], 1
    %236 = vsyncpa [#allocation9], 1
    %237 = vsyncpa [#allocation4], 1

</llo_original>
